<compile_context>
chip_gen: v6e
topology: v6e:2x2x1
jax: 0.10.0
libtpu: 0.0.40
codegen_flags: <defaults>
</compile_context>

<pallas_src>
import functools

import jax
import jax.numpy as jnp
import numpy as np
from jax.experimental import pallas as pl
from jax.experimental.pallas import tpu as pltpu


# ----------------------------------------------------------------------------
# Fused kernel: one batch tile -> softmax probabilities (lane-padded) for that tile.
# ----------------------------------------------------------------------------
def _mlp_kernel(x_ref, w1_ref, b1_ref, w2_ref, b2_ref, w3_ref, b3_ref,
                w4_ref, b4_ref, o_ref):
    def sigmoid(z):
        # sigmoid(z) = 0.5*(tanh(z/2)+1): tanh runs on the EUP slot instead of
        # a multi-instruction VALU divide.
        return 0.5 * (jnp.tanh(0.5 * z) + 1.0)

    def dense(h, w_ref, b_ref):
        # bf16 operands feed the MXU natively; accumulate in f32; bias add in f32.
        return jnp.dot(h.astype(jnp.bfloat16), w_ref[...],
                       preferred_element_type=jnp.float32) + b_ref[...]

    h = x_ref[...]                                   # (TB, in_dim) f32
    h = sigmoid(dense(h, w1_ref, b1_ref))            # (TB, 512)
    h = sigmoid(dense(h, w2_ref, b2_ref))            # (TB, 256)
    h = sigmoid(dense(h, w3_ref, b3_ref))            # (TB, 128)
    logits = dense(h, w4_ref, b4_ref)                # (TB, C_pad); padded lanes = -1e30

    # Numerically stable softmax over the (lane-dense) class dim.
    m = jnp.max(logits, axis=-1, keepdims=True)
    e = jnp.exp(logits - m)                          # padded lanes -> exp(-1e30) == 0
    inv = 1.0 / jnp.sum(e, axis=-1, keepdims=True)   # one reciprocal per row
    o_ref[...] = e * inv


# ----------------------------------------------------------------------------
# Batch tiling: big tiles (<=256), pad only when needed, >=2 grid steps when
# there is enough work so the "parallel" axis can span both v7x TensorCores.
# ----------------------------------------------------------------------------
def _tiling(B):
    if B <= 8:
        return B, B                       # single full-dim block, no padding
    b_pad = -(-B // 8) * 8                # round batch up to the f32 sublane (8)
    tb = min(256, b_pad)
    if b_pad // tb < 2 and b_pad >= 16:   # give the parallel grid >= 2 steps
        tb = -(-(b_pad // 2) // 8) * 8
    b_pad = -(-b_pad // tb) * tb
    return b_pad, tb


# ----------------------------------------------------------------------------
# Jitted forward.
# ----------------------------------------------------------------------------
@functools.partial(jax.jit, static_argnums=(2,))
def _mlp_forward(x, params, num_cls):
    w1, b1, w2, b2, w3, b3, w4, b4 = params
    B, in_dim = x.shape
    c_pad = w4.shape[1]                   # classifier already lane-padded (>=128)
    h1, h2, h3 = w1.shape[1], w2.shape[1], w3.shape[1]

    b_pad, tb = _tiling(B)
    if b_pad != B:
        x = jnp.pad(x, ((0, b_pad - B), (0, 0)))

    grid = (b_pad // tb,)
    full = lambda i: (0, 0)               # weights/biases: same block every step

    flops = 2 * b_pad * (in_dim * h1 + h1 * h2 + h2 * h3 + h3 * c_pad)
    transcendentals = b_pad * (h1 + h2 + h3 + c_pad + 1)
    bytes_accessed = (x.size * x.dtype.itemsize
                      + sum(int(p.size) * p.dtype.itemsize for p in params)
                      + b_pad * c_pad * 4)

    out = pl.pallas_call(
        _mlp_kernel,
        out_shape=jax.ShapeDtypeStruct((b_pad, c_pad), jnp.float32),
        grid=grid,
        in_specs=[
            pl.BlockSpec((tb, in_dim), lambda i: (i, 0)),   # x tile
            pl.BlockSpec(w1.shape, full), pl.BlockSpec(b1.shape, full),
            pl.BlockSpec(w2.shape, full), pl.BlockSpec(b2.shape, full),
            pl.BlockSpec(w3.shape, full), pl.BlockSpec(b3.shape, full),
            pl.BlockSpec(w4.shape, full), pl.BlockSpec(b4.shape, full),
        ],
        out_specs=pl.BlockSpec((tb, c_pad), lambda i: (i, 0)),
        compiler_params=pltpu.CompilerParams(
            dimension_semantics=("parallel",)),
        cost_estimate=pl.CostEstimate(flops=flops,
                                      transcendentals=transcendentals,
                                      bytes_accessed=bytes_accessed),
    )(x, w1, b1, w2, b2, w3, b3, w4, b4)

    return out[:B, :num_cls]


class BaseLineMLPPallas:
    """JAX/Pallas port of the PyTorch BaseLine_MLP forward (inference semantics)."""

    HIDDEN = (512, 256, 128)

    def __init__(self, in_dim, num_cls, dropout=0.1, seed=0):
        self.in_dim = in_dim
        self.num_cls = num_cls
        self.dropout = dropout            # identity at inference time
        self.c_pad = max(128, -(-num_cls // 128) * 128)

        dims = [in_dim, *self.HIDDEN, num_cls]
        key = jax.random.PRNGKey(seed)
        params = []
        n_layers = len(dims) - 1
        for li, (d_in, d_out) in enumerate(zip(dims[:-1], dims[1:])):
            key, kw, kb = jax.random.split(key, 3)
            bound = 1.0 / np.sqrt(d_in)
            # Stored as (in, out) so the kernel does x @ W (equivalent to PyTorch's
            # x @ W.T with W ~ U(-1/sqrt(fan_in), 1/sqrt(fan_in))).
            w = jax.random.uniform(kw, (d_in, d_out), jnp.float32, -bound, bound)
            b = jax.random.uniform(kb, (1, d_out), jnp.float32, -bound, bound)
            if li == n_layers - 1:
                # Lane-dense classifier: zero weight columns, -1e30 bias so the
                # padded lanes softmax to exactly 0.
                w = jnp.pad(w, ((0, 0), (0, self.c_pad - d_out)))
                b = jnp.pad(b, ((0, 0), (0, self.c_pad - d_out)),
                            constant_values=-1e30)
            params.append(w.astype(jnp.bfloat16))   # MXU-native weight storage
            params.append(b)                        # biases stay f32
        self.params = tuple(params)

    def __call__(self, x, y=None):
        probs = _mlp_forward(jnp.asarray(x, jnp.float32), self.params, self.num_cls)
        if y is not None:
            return probs, y   # mirrors PyTorch's (res, y) branch (no loss_func)
        return probs


# ----------------------------------------------------------------------------
# Pure-numpy f32 reference of the forward (eval mode) using the stored params.
# ----------------------------------------------------------------------------
def _reference(x, params, num_cls):
    w1, b1, w2, b2, w3, b3, w4, b4 = [np.asarray(p).astype(np.float32)
                                      for p in params]
    x = np.asarray(x, np.float32)

    def sig(z):
        return 1.0 / (1.0 + np.exp(-z))

    h = sig(x @ w1 + b1)
    h = sig(h @ w2 + b2)
    h = sig(h @ w3 + b3)
    logits = h @ w4[:, :num_cls] + b4[:, :num_cls]
    m = logits.max(-1, keepdims=True)
    e = np.exp(logits - m)
    return e / e.sum(-1, keepdims=True)


def _check(model, x, y, num_cls, atol):
    probs, _ = model(x, y)
    probs = np.asarray(jax.block_until_ready(probs))
    ref = _reference(x, model.params, num_cls)
    if probs.shape != ref.shape:
        raise RuntimeError(f"shape mismatch {probs.shape} vs {ref.shape}")
    if not np.allclose(probs, ref, atol=atol, rtol=atol):
        raise RuntimeError("Pallas kernel output mismatch vs reference")
    if not np.allclose(probs.sum(-1), 1.0, atol=1e-4):
        raise RuntimeError("Softmax rows do not sum to 1")


if __name__ == "__main__":
    in_dim, num_cls = 32, 10
    model = BaseLineMLPPallas(in_dim, num_cls, dropout=0.1, seed=0)

    key = jax.random.PRNGKey(0)
    kx, ky, kx2, ky2 = jax.random.split(key, 4)

    # Small single-tile case (B=2).
    x = jax.random.normal(kx, (2, in_dim), jnp.float32)
    y = jax.random.randint(ky, (2,), 0, num_cls)
    _check(model, x, y, num_cls, atol=1e-2)   # bf16 matmul inputs -> relaxed tol

    # Multi-tile case with a ragged tail (B=13 -> padded to 16, grid of 2).
    x2 = jax.random.normal(kx2, (13, in_dim), jnp.float32)
    y2 = jax.random.randint(ky2, (13,), 0, num_cls)
    _check(model, x2, y2, num_cls, atol=1e-2)

    print("KERNEL_OK")
</pallas_src>

<mosaic_0001>
module attributes {stable_mosaic.version = 11 : i64} {
  func.func @_mlp_kernel(%arg0: i32, %arg1: memref<2x32xf32, #tpu.memory_space<vmem>>, %arg2: memref<32x512xbf16, #tpu.memory_space<vmem>>, %arg3: memref<1x512xf32, #tpu.memory_space<vmem>>, %arg4: memref<512x256xbf16, #tpu.memory_space<vmem>>, %arg5: memref<1x256xf32, #tpu.memory_space<vmem>>, %arg6: memref<256x128xbf16, #tpu.memory_space<vmem>>, %arg7: memref<1x128xf32, #tpu.memory_space<vmem>>, %arg8: memref<128x128xbf16, #tpu.memory_space<vmem>>, %arg9: memref<1x128xf32, #tpu.memory_space<vmem>>, %arg10: memref<2x128xf32, #tpu.memory_space<vmem>>) attributes {dimension_semantics = [#tpu.dimension_semantics<parallel>], iteration_bounds = array<i64: 1>, scalar_prefetch = 0 : i64, scratch_operands = 0 : i64, tpu.core_type = #tpu.core_type<tc>, window_params = [{transform_indices = @transform_0, window_bounds = array<i64: 2, 32>}, {pipeline_mode = #tpu.pipeline_mode<synchronous>, transform_indices = @transform_1, window_bounds = array<i64: 32, 512>}, {pipeline_mode = #tpu.pipeline_mode<synchronous>, transform_indices = @transform_2, window_bounds = array<i64: 1, 512>}, {pipeline_mode = #tpu.pipeline_mode<synchronous>, transform_indices = @transform_3, window_bounds = array<i64: 512, 256>}, {pipeline_mode = #tpu.pipeline_mode<synchronous>, transform_indices = @transform_4, window_bounds = array<i64: 1, 256>}, {pipeline_mode = #tpu.pipeline_mode<synchronous>, transform_indices = @transform_5, window_bounds = array<i64: 256, 128>}, {pipeline_mode = #tpu.pipeline_mode<synchronous>, transform_indices = @transform_6, window_bounds = array<i64: 1, 128>}, {pipeline_mode = #tpu.pipeline_mode<synchronous>, transform_indices = @transform_7, window_bounds = array<i64: 128, 128>}, {pipeline_mode = #tpu.pipeline_mode<synchronous>, transform_indices = @transform_8, window_bounds = array<i64: 1, 128>}, {transform_indices = @transform_9, window_bounds = array<i64: 2, 128>}]} {
    %c0 = arith.constant 0 : index
    %c0_0 = arith.constant 0 : index
    %0 = vector.load %arg1[%c0, %c0_0] : memref<2x32xf32, #tpu.memory_space<vmem>>, vector<2x32xf32>
    %1 = arith.truncf %0 : vector<2x32xf32> to vector<2x32xbf16>
    %c0_1 = arith.constant 0 : index
    %c0_2 = arith.constant 0 : index
    %2 = vector.load %arg2[%c0_1, %c0_2] : memref<32x512xbf16, #tpu.memory_space<vmem>>, vector<32x512xbf16>
    %cst = arith.constant dense<0.000000e+00> : vector<2x512xf32>
    %3 = tpu.matmul %1, %2, %cst {dimension_numbers = #tpu.dot_dimension_numbers<[1], [0], [0], [1], [0, 0, 1, 1], [], []>} : vector<2x32xbf16>, vector<32x512xbf16>, vector<2x512xf32> -> vector<2x512xf32>
    %c0_3 = arith.constant 0 : index
    %c0_4 = arith.constant 0 : index
    %4 = vector.load %arg3[%c0_3, %c0_4] : memref<1x512xf32, #tpu.memory_space<vmem>>, vector<1x512xf32>
    %5 = vector.broadcast %4 : vector<1x512xf32> to vector<2x512xf32>
    %6 = arith.addf %3, %5 : vector<2x512xf32>
    %cst_5 = arith.constant 5.000000e-01 : f32
    %7 = vector.broadcast %cst_5 : f32 to vector<2x512xf32>
    %8 = arith.mulf %7, %6 : vector<2x512xf32>
    %9 = math.tanh %8 : vector<2x512xf32>
    %cst_6 = arith.constant 1.000000e+00 : f32
    %10 = vector.broadcast %cst_6 : f32 to vector<2x512xf32>
    %11 = arith.addf %9, %10 : vector<2x512xf32>
    %cst_7 = arith.constant 5.000000e-01 : f32
    %12 = vector.broadcast %cst_7 : f32 to vector<2x512xf32>
    %13 = arith.mulf %12, %11 : vector<2x512xf32>
    %14 = arith.truncf %13 : vector<2x512xf32> to vector<2x512xbf16>
    %c0_8 = arith.constant 0 : index
    %c0_9 = arith.constant 0 : index
    %15 = vector.load %arg4[%c0_8, %c0_9] : memref<512x256xbf16, #tpu.memory_space<vmem>>, vector<512x256xbf16>
    %cst_10 = arith.constant dense<0.000000e+00> : vector<2x256xf32>
    %16 = tpu.matmul %14, %15, %cst_10 {dimension_numbers = #tpu.dot_dimension_numbers<[1], [0], [0], [1], [0, 0, 1, 1], [], []>} : vector<2x512xbf16>, vector<512x256xbf16>, vector<2x256xf32> -> vector<2x256xf32>
    %c0_11 = arith.constant 0 : index
    %c0_12 = arith.constant 0 : index
    %17 = vector.load %arg5[%c0_11, %c0_12] : memref<1x256xf32, #tpu.memory_space<vmem>>, vector<1x256xf32>
    %18 = vector.broadcast %17 : vector<1x256xf32> to vector<2x256xf32>
    %19 = arith.addf %16, %18 : vector<2x256xf32>
    %cst_13 = arith.constant 5.000000e-01 : f32
    %20 = vector.broadcast %cst_13 : f32 to vector<2x256xf32>
    %21 = arith.mulf %20, %19 : vector<2x256xf32>
    %22 = math.tanh %21 : vector<2x256xf32>
    %cst_14 = arith.constant 1.000000e+00 : f32
    %23 = vector.broadcast %cst_14 : f32 to vector<2x256xf32>
    %24 = arith.addf %22, %23 : vector<2x256xf32>
    %cst_15 = arith.constant 5.000000e-01 : f32
    %25 = vector.broadcast %cst_15 : f32 to vector<2x256xf32>
    %26 = arith.mulf %25, %24 : vector<2x256xf32>
    %27 = arith.truncf %26 : vector<2x256xf32> to vector<2x256xbf16>
    %c0_16 = arith.constant 0 : index
    %c0_17 = arith.constant 0 : index
    %28 = vector.load %arg6[%c0_16, %c0_17] : memref<256x128xbf16, #tpu.memory_space<vmem>>, vector<256x128xbf16>
    %cst_18 = arith.constant dense<0.000000e+00> : vector<2x128xf32>
    %29 = tpu.matmul %27, %28, %cst_18 {dimension_numbers = #tpu.dot_dimension_numbers<[1], [0], [0], [1], [0, 0, 1, 1], [], []>} : vector<2x256xbf16>, vector<256x128xbf16>, vector<2x128xf32> -> vector<2x128xf32>
    %c0_19 = arith.constant 0 : index
    %c0_20 = arith.constant 0 : index
    %30 = vector.load %arg7[%c0_19, %c0_20] : memref<1x128xf32, #tpu.memory_space<vmem>>, vector<1x128xf32>
    %31 = vector.broadcast %30 : vector<1x128xf32> to vector<2x128xf32>
    %32 = arith.addf %29, %31 : vector<2x128xf32>
    %cst_21 = arith.constant 5.000000e-01 : f32
    %33 = vector.broadcast %cst_21 : f32 to vector<2x128xf32>
    %34 = arith.mulf %33, %32 : vector<2x128xf32>
    %35 = math.tanh %34 : vector<2x128xf32>
    %cst_22 = arith.constant 1.000000e+00 : f32
    %36 = vector.broadcast %cst_22 : f32 to vector<2x128xf32>
    %37 = arith.addf %35, %36 : vector<2x128xf32>
    %cst_23 = arith.constant 5.000000e-01 : f32
    %38 = vector.broadcast %cst_23 : f32 to vector<2x128xf32>
    %39 = arith.mulf %38, %37 : vector<2x128xf32>
    %40 = arith.truncf %39 : vector<2x128xf32> to vector<2x128xbf16>
    %c0_24 = arith.constant 0 : index
    %c0_25 = arith.constant 0 : index
    %41 = vector.load %arg8[%c0_24, %c0_25] : memref<128x128xbf16, #tpu.memory_space<vmem>>, vector<128x128xbf16>
    %cst_26 = arith.constant dense<0.000000e+00> : vector<2x128xf32>
    %42 = tpu.matmul %40, %41, %cst_26 {dimension_numbers = #tpu.dot_dimension_numbers<[1], [0], [0], [1], [0, 0, 1, 1], [], []>} : vector<2x128xbf16>, vector<128x128xbf16>, vector<2x128xf32> -> vector<2x128xf32>
    %c0_27 = arith.constant 0 : index
    %c0_28 = arith.constant 0 : index
    %43 = vector.load %arg9[%c0_27, %c0_28] : memref<1x128xf32, #tpu.memory_space<vmem>>, vector<1x128xf32>
    %44 = vector.broadcast %43 : vector<1x128xf32> to vector<2x128xf32>
    %45 = arith.addf %42, %44 : vector<2x128xf32>
    %cst_29 = arith.constant dense<0xFF800000> : vector<2xf32>
    %46 = vector.multi_reduction <maximumf>, %45, %cst_29 [1] : vector<2x128xf32> to vector<2xf32>
    %47 = vector.shape_cast %46 : vector<2xf32> to vector<2x1xf32>
    %48 = vector.broadcast %47 : vector<2x1xf32> to vector<2x128xf32>
    %49 = arith.subf %45, %48 : vector<2x128xf32>
    %50 = math.exp %49 : vector<2x128xf32>
    %cst_30 = arith.constant dense<0.000000e+00> : vector<2xf32>
    %51 = vector.multi_reduction <add>, %50, %cst_30 [1] : vector<2x128xf32> to vector<2xf32>
    %52 = vector.shape_cast %51 : vector<2xf32> to vector<2x1xf32>
    %cst_31 = arith.constant 1.000000e+00 : f32
    %53 = vector.broadcast %cst_31 : f32 to vector<2x1xf32>
    %54 = arith.divf %53, %52 : vector<2x1xf32>
    %55 = vector.broadcast %54 : vector<2x1xf32> to vector<2x128xf32>
    %56 = arith.mulf %50, %55 : vector<2x128xf32>
    %c0_32 = arith.constant 0 : index
    %c0_33 = arith.constant 0 : index
    %57 = vector.load %arg10[%c0_32, %c0_33] : memref<2x128xf32, #tpu.memory_space<vmem>>, vector<2x128xf32>
    tpu.vector_store %arg10[%c0_32, %c0_33], %56 {strides = array<i32>} : memref<2x128xf32, #tpu.memory_space<vmem>>, vector<2x128xf32>,
    return
  }
  func.func @transform_0(%arg0: i32) -> (i32, i32) {
    %c0_i32 = arith.constant 0 : i32
    %c0_i32_0 = arith.constant 0 : i32
    return %arg0, %c0_i32 : i32, i32
  }
  func.func @transform_1(%arg0: i32) -> (i32, i32) {
    %c0_i32 = arith.constant 0 : i32
    %c0_i32_0 = arith.constant 0 : i32
    %c0_i32_1 = arith.constant 0 : i32
    return %c0_i32, %c0_i32_0 : i32, i32
  }
  func.func @transform_2(%arg0: i32) -> (i32, i32) {
    %c0_i32 = arith.constant 0 : i32
    %c0_i32_0 = arith.constant 0 : i32
    %c0_i32_1 = arith.constant 0 : i32
    return %c0_i32, %c0_i32_0 : i32, i32
  }
  func.func @transform_3(%arg0: i32) -> (i32, i32) {
    %c0_i32 = arith.constant 0 : i32
    %c0_i32_0 = arith.constant 0 : i32
    %c0_i32_1 = arith.constant 0 : i32
    return %c0_i32, %c0_i32_0 : i32, i32
  }
  func.func @transform_4(%arg0: i32) -> (i32, i32) {
    %c0_i32 = arith.constant 0 : i32
    %c0_i32_0 = arith.constant 0 : i32
    %c0_i32_1 = arith.constant 0 : i32
    return %c0_i32, %c0_i32_0 : i32, i32
  }
  func.func @transform_5(%arg0: i32) -> (i32, i32) {
    %c0_i32 = arith.constant 0 : i32
    %c0_i32_0 = arith.constant 0 : i32
    %c0_i32_1 = arith.constant 0 : i32
    return %c0_i32, %c0_i32_0 : i32, i32
  }
  func.func @transform_6(%arg0: i32) -> (i32, i32) {
    %c0_i32 = arith.constant 0 : i32
    %c0_i32_0 = arith.constant 0 : i32
    %c0_i32_1 = arith.constant 0 : i32
    return %c0_i32, %c0_i32_0 : i32, i32
  }
  func.func @transform_7(%arg0: i32) -> (i32, i32) {
    %c0_i32 = arith.constant 0 : i32
    %c0_i32_0 = arith.constant 0 : i32
    %c0_i32_1 = arith.constant 0 : i32
    return %c0_i32, %c0_i32_0 : i32, i32
  }
  func.func @transform_8(%arg0: i32) -> (i32, i32) {
    %c0_i32 = arith.constant 0 : i32
    %c0_i32_0 = arith.constant 0 : i32
    %c0_i32_1 = arith.constant 0 : i32
    return %c0_i32, %c0_i32_0 : i32, i32
  }
  func.func @transform_9(%arg0: i32) -> (i32, i32) {
    %c0_i32 = arith.constant 0 : i32
    %c0_i32_0 = arith.constant 0 : i32
    return %arg0, %c0_i32 : i32, i32
  }
}

</mosaic_0001>

<llo_original>
// kernel: _mlp_forward.1
$region0: #{_mlp_forward.1}
  #allocation0 [shape = 'u32[]', space=smem, size = 0x4, offset = 0x4, fixed_abs, tag = 'smem constant byte address 0x4 - core index']
  #allocation1 [shape = 'u32[144,128]{1,0:T(1,128)}', space=vmem, size = 0x12000, scoped, tag = 'internal scratch']
  %s0 = inlined_call_operand.hbm [shape: f32[2,32], index: 0, kind: input, shape index: {}]
  %s1 = inlined_call_operand.hbm [shape: bf16[32,512], index: 1, kind: input, shape index: {}]
  %s2 = inlined_call_operand.hbm [shape: f32[1,512], index: 2, kind: input, shape index: {}]
  %s3 = inlined_call_operand.hbm [shape: bf16[512,256], index: 3, kind: input, shape index: {}]
  %s4 = inlined_call_operand.vmem [shape: f32[1,256], index: 4, kind: input, shape index: {}]
  %s5 = inlined_call_operand.hbm [shape: bf16[256,128], index: 5, kind: input, shape index: {}]
  %s6 = inlined_call_operand.vmem [shape: f32[1,128], index: 6, kind: input, shape index: {}]
  %s7 = inlined_call_operand.hbm [shape: bf16[128,128], index: 7, kind: input, shape index: {}]
  %s8 = inlined_call_operand.vmem [shape: f32[1,128], index: 8, kind: input, shape index: {}]
  %s9 = inlined_call_operand.hbm [shape: f32[2,128], index: 9, kind: output, shape index: {}]
  %s10 = sld [smem:[#allocation0]]
  $region70: #{_mlp_forward.1} parent=0
    _
  %s12 = ssub.s32 1, %s10
  %s13 = scalar_select 0, %s12, %s10
  $region1: #{_mlp_forward.1} parent=0
    #allocation2 [shape = 'u8[1024]{0}', space=vmem, size = 0x400, scoped, tag = 'input window, operand 0, single buffered']
    #allocation3 [shape = 's32[1]{0}', space=sflag, size = 0x4, scoped, tag = 'scoped memory for _mlp_forward.1']
    #allocation4 [shape = 's32[1]{0}', space=sflag, size = 0x4, scoped, tag = 'scoped memory for _mlp_forward.1']
    #allocation5 [shape = 'u8[32768]{0}', space=vmem, size = 0x8000, scoped, tag = 'input window, operand 1, single buffered']
    #allocation6 [shape = 's32[1]{0}', space=sflag, size = 0x4, scoped, tag = 'scoped memory for _mlp_forward.1']
    #allocation7 [shape = 'u8[2048]{0}', space=vmem, size = 0x800, scoped, tag = 'input window, operand 2, single buffered']
    #allocation8 [shape = 'u8[262144]{0}', space=vmem, size = 0x40000, scoped, tag = 'input window, operand 3, single buffered']
    #allocation9 [shape = 's32[1]{0}', space=sflag, size = 0x4, scoped, tag = 'scoped memory for _mlp_forward.1']
    #allocation10 [shape = 'u8[65536]{0}', space=vmem, size = 0x10000, scoped, tag = 'input window, operand 5, single buffered']
    #allocation11 [shape = 'u8[32768]{0}', space=vmem, size = 0x8000, scoped, tag = 'input window, operand 7, single buffered']
    #allocation12 [shape = 's32[1]{0}', space=sflag, size = 0x4, scoped, tag = 'scoped memory for _mlp_forward.1']
    #allocation13 [shape = 'u8[1024]{0}', space=vmem, size = 0x400, scoped, tag = 'output window, operand 0, single buffered']
    %14 = vsyncpa [#allocation3], 0
    %15 = vsyncpa [#allocation6], 0
    %16 = vsyncpa [#allocation9], 0
    %17 = vsyncpa [#allocation12], 0
    %18 = vsyncpa [#allocation4], 0
    // Predicated region
    $region2: #{_mlp_forward.1} parent=1 // pred_check
      _
    $region3: #{_mlp_forward.1} parent=1 // pred_check_branch
      %20 = sbr.rel (0) target = $region5
    $region4: #{_mlp_forward.1} parent=1 // pred_region
      %s22 = ssub.s32 32, 32
      %23 = vsyncadd [#allocation3], %s22
      %s25 = sshll.u32 [#allocation2], 4
      %s26 = int_to_ptr.vmem [resolvable:$true] %s25
      %28 = dma.hbm_to_vmem [thread:$0]  %s0, 32, %s26, [#allocation3]
    $region5: #{_mlp_forward.1} parent=1 // pred_fallthru
      _
    // Predicated region
    $region6: #{_mlp_forward.1} parent=1 // pred_check
      _
    $region7: #{_mlp_forward.1} parent=1 // pred_check_branch
      %30 = sbr.rel (0) target = $region9
    $region8: #{_mlp_forward.1} parent=1 // pred_region
      %s32 = ssub.s32 1024, 1024
      %33 = vsyncadd [#allocation6], %s32
      %s34 = sshll.u32 [#allocation5], 4
      %s35 = int_to_ptr.vmem [resolvable:$true] %s34
      %40 = dma.hbm_to_vmem [thread:$0]  %s1, 1024, %s35, [#allocation6], 256, 256, 16
    $region9: #{_mlp_forward.1} parent=1 // pred_fallthru
      _
    // Predicated region
    $region10: #{_mlp_forward.1} parent=1 // pred_check
      _
    $region11: #{_mlp_forward.1} parent=1 // pred_check_branch
      %42 = sbr.rel (0) target = $region13
    $region12: #{_mlp_forward.1} parent=1 // pred_region
      %s44 = ssub.s32 64, 64
      %45 = vsyncadd [#allocation6], %s44
      %s47 = sshll.u32 [#allocation7], 4
      %s48 = int_to_ptr.vmem [resolvable:$true] %s47
      %50 = dma.hbm_to_vmem [thread:$0]  %s2, 64, %s48, [#allocation6]
    $region13: #{_mlp_forward.1} parent=1 // pred_fallthru
      _
    // Predicated region
    $region14: #{_mlp_forward.1} parent=1 // pred_check
      _
    $region15: #{_mlp_forward.1} parent=1 // pred_check_branch
      %52 = sbr.rel (0) target = $region17
    $region16: #{_mlp_forward.1} parent=1 // pred_region
      %s54 = ssub.s32 8192, 8192
      %55 = vsyncadd [#allocation9], %s54
      %s56 = sshll.u32 [#allocation8], 4
      %s57 = int_to_ptr.vmem [resolvable:$true] %s56
      %62 = dma.hbm_to_vmem [thread:$0]  %s3, 8192, %s57, [#allocation9], 128, 128, 8
    $region17: #{_mlp_forward.1} parent=1 // pred_fallthru
      _
    // Predicated region
    $region18: #{_mlp_forward.1} parent=1 // pred_check
      _
    $region19: #{_mlp_forward.1} parent=1 // pred_check_branch
      %64 = sbr.rel (0) target = $region21
    $region20: #{_mlp_forward.1} parent=1 // pred_region
      _
    $region21: #{_mlp_forward.1} parent=1 // pred_fallthru
      _
    // Predicated region
    $region22: #{_mlp_forward.1} parent=1 // pred_check
      _
    $region23: #{_mlp_forward.1} parent=1 // pred_check_branch
      %66 = sbr.rel (0) target = $region25
    $region24: #{_mlp_forward.1} parent=1 // pred_region
      %s68 = ssub.s32 2048, 2048
      %69 = vsyncadd [#allocation9], %s68
      %s70 = sshll.u32 [#allocation10], 4
      %s71 = int_to_ptr.vmem [resolvable:$true] %s70
      %76 = dma.hbm_to_vmem [thread:$0]  %s5, 2048, %s71, [#allocation9], 64, 64, 4
    $region25: #{_mlp_forward.1} parent=1 // pred_fallthru
      _
    // Predicated region
    $region26: #{_mlp_forward.1} parent=1 // pred_check
      _
    $region27: #{_mlp_forward.1} parent=1 // pred_check_branch
      %78 = sbr.rel (0) target = $region29
    $region28: #{_mlp_forward.1} parent=1 // pred_region
      _
    $region29: #{_mlp_forward.1} parent=1 // pred_fallthru
      _
    // Predicated region
    $region30: #{_mlp_forward.1} parent=1 // pred_check
      _
    $region31: #{_mlp_forward.1} parent=1 // pred_check_branch
      %80 = sbr.rel (0) target = $region33
    $region32: #{_mlp_forward.1} parent=1 // pred_region
      %s82 = ssub.s32 1024, 1024
      %83 = vsyncadd [#allocation12], %s82
      %s84 = sshll.u32 [#allocation11], 4
      %s85 = int_to_ptr.vmem [resolvable:$true] %s84
      %90 = dma.hbm_to_vmem [thread:$0]  %s7, 1024, %s85, [#allocation12], 64, 64, 4
    $region33: #{_mlp_forward.1} parent=1 // pred_fallthru
      _
    // Predicated region
    $region34: #{_mlp_forward.1} parent=1 // pred_check
      _
    $region35: #{_mlp_forward.1} parent=1 // pred_check_branch
      %92 = sbr.rel (0) target = $region37
    $region36: #{_mlp_forward.1} parent=1 // pred_region
      _
    $region37: #{_mlp_forward.1} parent=1 // pred_fallthru
      _
    // Predicated region
    $region38: #{_mlp_forward.1} parent=1 // pred_check
      _
    $region39: #{_mlp_forward.1} parent=1 // pred_check_branch
      %94 = sbr.rel (0) target = $region41
    $region40: #{_mlp_forward.1} parent=1 // pred_region
      %95 = dma.done [#allocation3], 32
    $region41: #{_mlp_forward.1} parent=1 // pred_fallthru
      _
    // Predicated region
    $region42: #{_mlp_forward.1} parent=1 // pred_check
      _
    $region43: #{_mlp_forward.1} parent=1 // pred_check_branch
      %97 = sbr.rel (0) target = $region45
    $region44: #{_mlp_forward.1} parent=1 // pred_region
      %98 = dma.done [#allocation6], 1024
    $region45: #{_mlp_forward.1} parent=1 // pred_fallthru
      _
    // Predicated region
    $region46: #{_mlp_forward.1} parent=1 // pred_check
      _
    $region47: #{_mlp_forward.1} parent=1 // pred_check_branch
      %100 = sbr.rel (0) target = $region49
    $region48: #{_mlp_forward.1} parent=1 // pred_region
      %101 = dma.done [#allocation6], 64
    $region49: #{_mlp_forward.1} parent=1 // pred_fallthru
      _
    // Predicated region
    $region50: #{_mlp_forward.1} parent=1 // pred_check
      _
    $region51: #{_mlp_forward.1} parent=1 // pred_check_branch
      %103 = sbr.rel (0) target = $region53
    $region52: #{_mlp_forward.1} parent=1 // pred_region
      %104 = dma.done [#allocation9], 8192
    $region53: #{_mlp_forward.1} parent=1 // pred_fallthru
      _
    // Predicated region
    $region54: #{_mlp_forward.1} parent=1 // pred_check
      _
    $region55: #{_mlp_forward.1} parent=1 // pred_check_branch
      %106 = sbr.rel (0) target = $region57
    $region56: #{_mlp_forward.1} parent=1 // pred_region
      %107 = dma.done [#allocation9], 2048
    $region57: #{_mlp_forward.1} parent=1 // pred_fallthru
      _
    // Predicated region
    $region58: #{_mlp_forward.1} parent=1 // pred_check
      _
    $region59: #{_mlp_forward.1} parent=1 // pred_check_branch
      %109 = sbr.rel (0) target = $region61
    $region60: #{_mlp_forward.1} parent=1 // pred_region
      %110 = dma.done [#allocation12], 1024
    $region61: #{_mlp_forward.1} parent=1 // pred_fallthru
      _
    %v112 = vld [vmem:[#allocation2] sm:$0x3]
    %v113 = vpack.c.bf16 %v112, %v112
    %v114 = vld [vmem:[#allocation5] sm:$0xff]
    %v115 = vld [vmem:[#allocation5 + $0x8] sm:$0xff]
    %v116 = vld [vmem:[#allocation5 + $0x10] sm:$0xff]
    %v117 = vld [vmem:[#allocation5 + $0x18] sm:$0xff]
    %v118 = vld [vmem:[#allocation5 + $0x20] sm:$0xff]
    %v119 = vld [vmem:[#allocation5 + $0x28] sm:$0xff]
    %v120 = vld [vmem:[#allocation5 + $0x30] sm:$0xff]
    %v121 = vld [vmem:[#allocation5 + $0x38] sm:$0xff]
    %v122 = vld [vmem:[#allocation7] sm:$0xf]
    %v124 = vlaneseq
    %v125 = vshrl.u32 %v124, 7
    %v126 = vsub.s32 0, %v125
    %v127 = vrot.slane %v122, %v126
    %v128 = vlaneseq
    %v129 = vshrl.u32 %v128, 7
    %v130 = vsub.s32 1, %v129
    %v131 = vrot.slane %v122, %v130
    %v132 = vlaneseq
    %v133 = vshrl.u32 %v132, 7
    %v134 = vsub.s32 2, %v133
    %v135 = vrot.slane %v122, %v134
    %v136 = vlaneseq
    %v137 = vshrl.u32 %v136, 7
    %v138 = vsub.s32 3, %v137
    %v139 = vrot.slane %v122, %v138
    %v152 = vunpack.c.l.b16 %v114
    %v153 = vunpack.c.h.b16 %v114
    %v154 = vunpack.c.l.b16 %v115
    %v155 = vunpack.c.h.b16 %v115
    %v156 = vunpack.c.l.b16 %v116
    %v157 = vunpack.c.h.b16 %v116
    %v158 = vunpack.c.l.b16 %v117
    %v159 = vunpack.c.h.b16 %v117
    %v160 = vunpack.c.l.b16 %v118
    %v161 = vunpack.c.h.b16 %v118
    %v162 = vunpack.c.l.b16 %v119
    %v163 = vunpack.c.h.b16 %v119
    %v164 = vunpack.c.l.b16 %v120
    %v165 = vunpack.c.h.b16 %v120
    %v166 = vunpack.c.l.b16 %v121
    %v167 = vunpack.c.h.b16 %v121
    %v168 = vpack.c.b16 %v156, %v152
    %v169 = vpack.c.b16 %v157, %v153
    %v170 = vpack.c.b16 %v158, %v154
    %v171 = vpack.c.b16 %v159, %v155
    %v172 = vpack.c.b16 %v164, %v160
    %v173 = vpack.c.b16 %v165, %v161
    %v174 = vpack.c.b16 %v166, %v162
    %v175 = vpack.c.b16 %v167, %v163
    %vm184 = vcmask 261120
    %v186 = vsel %vm184, %v113, 0
    %188 = vmatprep.subr.bf16.mxu0 0
    %189 = vmatpush1.bf16.msra.mxu0 0
    %190 = vmatprep.subr.bf16.mxu0 0
    %191 = vmatpush1.bf16.msra.mxu0 0
    %192 = vmatprep.subr.bf16.mxu0 0
    %193 = vmatpush1.bf16.msra.mxu0 0
    %194 = vmatprep.subr.bf16.mxu0 0
    %195 = vmatpush1.bf16.msra.mxu0 0
    %196 = vmatprep.subr.bf16.mxu0 0
    %197 = vmatpush1.bf16.msra.mxu0 0
    %198 = vmatprep.subr.bf16.mxu0 0
    %199 = vmatpush1.bf16.msra.mxu0 0
    %200 = vmatprep.subr.bf16.mxu0 %v173
    %201 = vmatpush1.bf16.msra.mxu0 %v172
    %202 = vmatprep.subr.bf16.mxu0 %v169
    %203 = vmatpush1.bf16.msra.mxu0 %v168
    %204 = vmatprep.subr.bf16.mxu0 0
    %205 = vmatpush2.bf16.msra.mxu0 0
    %206 = vmatprep.subr.bf16.mxu0 0
    %207 = vmatpush2.bf16.msra.mxu0 0
    %208 = vmatprep.subr.bf16.mxu0 0
    %209 = vmatpush2.bf16.msra.mxu0 0
    %210 = vmatprep.subr.bf16.mxu0 0
    %211 = vmatpush2.bf16.msra.mxu0 0
    %212 = vmatprep.subr.bf16.mxu0 0
    %213 = vmatpush2.bf16.msra.mxu0 0
    %214 = vmatprep.subr.bf16.mxu0 0
    %215 = vmatpush2.bf16.msra.mxu0 0
    %216 = vmatprep.subr.bf16.mxu0 0
    %217 = vmatpush2.bf16.msra.mxu0 0
    %218 = vmatprep.subr.bf16.mxu0 0
    %219 = vmatpush2.bf16.msra.mxu0 0
    %220 = vmatprep.mubr.bf16.mxu0 0
    %221 = vmatmul.mubr.bf16.gmra.mxu0 %v186
    %v222 = vpop.f32.mrf.mxu0
    %v223 = vadd.f32 %v127, %v222
    %v224 = vpop.f32.mrf.mxu0
    %v225 = vadd.f32 %v131, %v224
    %v226 = vpop.f32.mrf.mxu0
    %v227 = vpop.f32.mrf.mxu0
    %228 = vdwg.mxu0
    %229 = vmatprep.subr.bf16.mxu0 0
    %230 = vmatpush1.bf16.msra.mxu0 0
    %231 = vmatprep.subr.bf16.mxu0 0
    %232 = vmatpush1.bf16.msra.mxu0 0
    %233 = vmatprep.subr.bf16.mxu0 0
    %234 = vmatpush1.bf16.msra.mxu0 0
    %235 = vmatprep.subr.bf16.mxu0 0
    %236 = vmatpush1.bf16.msra.mxu0 0
    %237 = vmatprep.subr.bf16.mxu0 0
    %238 = vmatpush1.bf16.msra.mxu0 0
    %239 = vmatprep.subr.bf16.mxu0 0
    %240 = vmatpush1.bf16.msra.mxu0 0
    %241 = vmatprep.subr.bf16.mxu0 %v175
    %242 = vmatpush1.bf16.msra.mxu0 %v174
    %243 = vmatprep.subr.bf16.mxu0 %v171
    %244 = vmatpush1.bf16.msra.mxu0 %v170
    %245 = vmatprep.subr.bf16.mxu0 0
    %246 = vmatpush2.bf16.msra.mxu0 0
    %247 = vmatprep.subr.bf16.mxu0 0
    %248 = vmatpush2.bf16.msra.mxu0 0
    %249 = vmatprep.subr.bf16.mxu0 0
    %250 = vmatpush2.bf16.msra.mxu0 0
    %251 = vmatprep.subr.bf16.mxu0 0
    %252 = vmatpush2.bf16.msra.mxu0 0
    %253 = vmatprep.subr.bf16.mxu0 0
    %254 = vmatpush2.bf16.msra.mxu0 0
    %255 = vmatprep.subr.bf16.mxu0 0
    %256 = vmatpush2.bf16.msra.mxu0 0
    %257 = vmatprep.subr.bf16.mxu0 0
    %258 = vmatpush2.bf16.msra.mxu0 0
    %259 = vmatprep.subr.bf16.mxu0 0
    %260 = vmatpush2.bf16.msra.mxu0 0
    %261 = vmatprep.mubr.bf16.mxu0 0
    %262 = vmatmul.mubr.bf16.gmra.mxu0 %v186
    %v263 = vpop.f32.mrf.mxu0
    %v264 = vadd.f32 %v135, %v263
    %v265 = vpop.f32.mrf.mxu0
    %v266 = vadd.f32 %v139, %v265
    %v267 = vpop.f32.mrf.mxu0
    %v268 = vpop.f32.mrf.mxu0
    %269 = vdwg.mxu0
    %v270 = vmul.f32 %v223, 0.5
    %v271 = vmul.f32 %v225, 0.5
    %v272 = vmul.f32 %v264, 0.5
    %v273 = vmul.f32 %v266, 0.5
    %v274 = vtanh.pop %v270
    %v275 = vtanh.pop %v271
    %v276 = vtanh.pop %v272
    %v277 = vtanh.pop %v273
    %v278 = vadd.f32 %v274, 1.0
    %v279 = vadd.f32 %v275, 1.0
    %v280 = vadd.f32 %v276, 1.0
    %v281 = vadd.f32 %v277, 1.0
    %v282 = vmul.f32 %v278, 0.5
    %v283 = vmul.f32 %v279, 0.5
    %v284 = vmul.f32 %v280, 0.5
    %v285 = vmul.f32 %v281, 0.5
    %v286 = vpack.c.bf16 %v282, %v282
    %v287 = vpack.c.bf16 %v283, %v283
    %v288 = vpack.c.bf16 %v284, %v284
    %v289 = vpack.c.bf16 %v285, %v285
    %v290 = vld [vmem:[#allocation8] sm:$0xff]
    %v291 = vld [vmem:[#allocation8 + $0x8] sm:$0xff]
    %v292 = vld [vmem:[#allocation8 + $0x10] sm:$0xff]
    %v293 = vld [vmem:[#allocation8 + $0x18] sm:$0xff]
    %v294 = vld [vmem:[#allocation8 + $0x20] sm:$0xff]
    %v295 = vld [vmem:[#allocation8 + $0x28] sm:$0xff]
    %v296 = vld [vmem:[#allocation8 + $0x30] sm:$0xff]
    %v297 = vld [vmem:[#allocation8 + $0x38] sm:$0xff]
    %v298 = vld [vmem:[#allocation8 + $0x40] sm:$0xff]
    %v299 = vld [vmem:[#allocation8 + $0x48] sm:$0xff]
    %v300 = vld [vmem:[#allocation8 + $0x50] sm:$0xff]
    %v301 = vld [vmem:[#allocation8 + $0x58] sm:$0xff]
    %v302 = vld [vmem:[#allocation8 + $0x60] sm:$0xff]
    %v303 = vld [vmem:[#allocation8 + $0x68] sm:$0xff]
    %v304 = vld [vmem:[#allocation8 + $0x70] sm:$0xff]
    %v305 = vld [vmem:[#allocation8 + $0x78] sm:$0xff]
    %v306 = vld [vmem:[#allocation8 + $0x80] sm:$0xff]
    %v307 = vld [vmem:[#allocation8 + $0x88] sm:$0xff]
    %v308 = vld [vmem:[#allocation8 + $0x90] sm:$0xff]
    %v309 = vld [vmem:[#allocation8 + $0x98] sm:$0xff]
    %v310 = vld [vmem:[#allocation8 + $0xa0] sm:$0xff]
    %v311 = vld [vmem:[#allocation8 + $0xa8] sm:$0xff]
    %v312 = vld [vmem:[#allocation8 + $0xb0] sm:$0xff]
    %v313 = vld [vmem:[#allocation8 + $0xb8] sm:$0xff]
    %v314 = vld [vmem:[#allocation8 + $0xc0] sm:$0xff]
    %v315 = vld [vmem:[#allocation8 + $0xc8] sm:$0xff]
    %v316 = vld [vmem:[#allocation8 + $0xd0] sm:$0xff]
    %v317 = vld [vmem:[#allocation8 + $0xd8] sm:$0xff]
    %v318 = vld [vmem:[#allocation8 + $0xe0] sm:$0xff]
    %v319 = vld [vmem:[#allocation8 + $0xe8] sm:$0xff]
    %v320 = vld [vmem:[#allocation8 + $0xf0] sm:$0xff]
    %v321 = vld [vmem:[#allocation8 + $0xf8] sm:$0xff]
    %v322 = vld [vmem:[#allocation8 + $0x100] sm:$0xff]
    %v323 = vld [vmem:[#allocation8 + $0x108] sm:$0xff]
    %v324 = vld [vmem:[#allocation8 + $0x110] sm:$0xff]
    %v325 = vld [vmem:[#allocation8 + $0x118] sm:$0xff]
    %v326 = vld [vmem:[#allocation8 + $0x120] sm:$0xff]
    %v327 = vld [vmem:[#allocation8 + $0x128] sm:$0xff]
    %v328 = vld [vmem:[#allocation8 + $0x130] sm:$0xff]
    %v329 = vld [vmem:[#allocation8 + $0x138] sm:$0xff]
    %v330 = vld [vmem:[#allocation8 + $0x140] sm:$0xff]
    %v331 = vld [vmem:[#allocation8 + $0x148] sm:$0xff]
    %v332 = vld [vmem:[#allocation8 + $0x150] sm:$0xff]
    %v333 = vld [vmem:[#allocation8 + $0x158] sm:$0xff]
    %v334 = vld [vmem:[#allocation8 + $0x160] sm:$0xff]
    %v335 = vld [vmem:[#allocation8 + $0x168] sm:$0xff]
    %v336 = vld [vmem:[#allocation8 + $0x170] sm:$0xff]
    %v337 = vld [vmem:[#allocation8 + $0x178] sm:$0xff]
    %v338 = vld [vmem:[#allocation8 + $0x180] sm:$0xff]
    %v339 = vld [vmem:[#allocation8 + $0x188] sm:$0xff]
    %v340 = vld [vmem:[#allocation8 + $0x190] sm:$0xff]
    %v341 = vld [vmem:[#allocation8 + $0x198] sm:$0xff]
    %v342 = vld [vmem:[#allocation8 + $0x1a0] sm:$0xff]
    %v343 = vld [vmem:[#allocation8 + $0x1a8] sm:$0xff]
    %v344 = vld [vmem:[#allocation8 + $0x1b0] sm:$0xff]
    %v345 = vld [vmem:[#allocation8 + $0x1b8] sm:$0xff]
    %v346 = vld [vmem:[#allocation8 + $0x1c0] sm:$0xff]
    %v347 = vld [vmem:[#allocation8 + $0x1c8] sm:$0xff]
    %v348 = vld [vmem:[#allocation8 + $0x1d0] sm:$0xff]
    %v349 = vld [vmem:[#allocation8 + $0x1d8] sm:$0xff]
    %v350 = vld [vmem:[#allocation8 + $0x1e0] sm:$0xff]
    %v351 = vld [vmem:[#allocation8 + $0x1e8] sm:$0xff]
    %v352 = vld [vmem:[#allocation8 + $0x1f0] sm:$0xff]
    %v353 = vld [vmem:[#allocation8 + $0x1f8] sm:$0xff]
    %v354 = vld [vmem:[%s4] sm:$0x3]
    %v356 = vlaneseq
    %v357 = vshrl.u32 %v356, 7
    %v358 = vsub.s32 0, %v357
    %v359 = vrot.slane %v354, %v358
    %v360 = vlaneseq
    %v361 = vshrl.u32 %v360, 7
    %v362 = vsub.s32 1, %v361
    %v363 = vrot.slane %v354, %v362
    %v430 = vunpack.c.l.b16 %v290
    %v431 = vunpack.c.h.b16 %v290
    %v432 = vunpack.c.l.b16 %v291
    %v433 = vunpack.c.h.b16 %v291
    %v434 = vunpack.c.l.b16 %v292
    %v435 = vunpack.c.h.b16 %v292
    %v436 = vunpack.c.l.b16 %v293
    %v437 = vunpack.c.h.b16 %v293
    %v438 = vunpack.c.l.b16 %v294
    %v439 = vunpack.c.h.b16 %v294
    %v440 = vunpack.c.l.b16 %v295
    %v441 = vunpack.c.h.b16 %v295
    %v442 = vunpack.c.l.b16 %v296
    %v443 = vunpack.c.h.b16 %v296
    %v444 = vunpack.c.l.b16 %v297
    %v445 = vunpack.c.h.b16 %v297
    %v446 = vunpack.c.l.b16 %v298
    %v447 = vunpack.c.h.b16 %v298
    %v448 = vunpack.c.l.b16 %v299
    %v449 = vunpack.c.h.b16 %v299
    %v450 = vunpack.c.l.b16 %v300
    %v451 = vunpack.c.h.b16 %v300
    %v452 = vunpack.c.l.b16 %v301
    %v453 = vunpack.c.h.b16 %v301
    %v454 = vunpack.c.l.b16 %v302
    %v455 = vunpack.c.h.b16 %v302
    %v456 = vunpack.c.l.b16 %v303
    %v457 = vunpack.c.h.b16 %v303
    %v458 = vunpack.c.l.b16 %v304
    %v459 = vunpack.c.h.b16 %v304
    %v460 = vunpack.c.l.b16 %v305
    %v461 = vunpack.c.h.b16 %v305
    %v462 = vunpack.c.l.b16 %v306
    %v463 = vunpack.c.h.b16 %v306
    %v464 = vunpack.c.l.b16 %v307
    %v465 = vunpack.c.h.b16 %v307
    %v466 = vunpack.c.l.b16 %v308
    %v467 = vunpack.c.h.b16 %v308
    %v468 = vunpack.c.l.b16 %v309
    %v469 = vunpack.c.h.b16 %v309
    %v470 = vunpack.c.l.b16 %v310
    %v471 = vunpack.c.h.b16 %v310
    %v472 = vunpack.c.l.b16 %v311
    %v473 = vunpack.c.h.b16 %v311
    %v474 = vunpack.c.l.b16 %v312
    %v475 = vunpack.c.h.b16 %v312
    %v476 = vunpack.c.l.b16 %v313
    %v477 = vunpack.c.h.b16 %v313
    %v478 = vunpack.c.l.b16 %v314
    %v479 = vunpack.c.h.b16 %v314
    %v480 = vunpack.c.l.b16 %v315
    %v481 = vunpack.c.h.b16 %v315
    %v482 = vunpack.c.l.b16 %v316
    %v483 = vunpack.c.h.b16 %v316
    %v484 = vunpack.c.l.b16 %v317
    %v485 = vunpack.c.h.b16 %v317
    %v486 = vunpack.c.l.b16 %v318
    %v487 = vunpack.c.h.b16 %v318
    %v488 = vunpack.c.l.b16 %v319
    %v489 = vunpack.c.h.b16 %v319
    %v490 = vunpack.c.l.b16 %v320
    %v491 = vunpack.c.h.b16 %v320
    %v492 = vunpack.c.l.b16 %v321
    %v493 = vunpack.c.h.b16 %v321
    %v494 = vunpack.c.l.b16 %v322
    %v495 = vunpack.c.h.b16 %v322
    %v496 = vunpack.c.l.b16 %v323
    %v497 = vunpack.c.h.b16 %v323
    %v498 = vunpack.c.l.b16 %v324
    %v499 = vunpack.c.h.b16 %v324
    %v500 = vunpack.c.l.b16 %v325
    %v501 = vunpack.c.h.b16 %v325
    %v502 = vunpack.c.l.b16 %v326
    %v503 = vunpack.c.h.b16 %v326
    %v504 = vunpack.c.l.b16 %v327
    %v505 = vunpack.c.h.b16 %v327
    %v506 = vunpack.c.l.b16 %v328
    %v507 = vunpack.c.h.b16 %v328
    %v508 = vunpack.c.l.b16 %v329
    %v509 = vunpack.c.h.b16 %v329
    %v510 = vunpack.c.l.b16 %v330
    %v511 = vunpack.c.h.b16 %v330
    %v512 = vunpack.c.l.b16 %v331
    %v513 = vunpack.c.h.b16 %v331
    %v514 = vunpack.c.l.b16 %v332
    %v515 = vunpack.c.h.b16 %v332
    %v516 = vunpack.c.l.b16 %v333
    %v517 = vunpack.c.h.b16 %v333
    %v518 = vunpack.c.l.b16 %v334
    %v519 = vunpack.c.h.b16 %v334
    %v520 = vunpack.c.l.b16 %v335
    %v521 = vunpack.c.h.b16 %v335
    %v522 = vunpack.c.l.b16 %v336
    %v523 = vunpack.c.h.b16 %v336
    %v524 = vunpack.c.l.b16 %v337
    %v525 = vunpack.c.h.b16 %v337
    %v526 = vunpack.c.l.b16 %v338
    %v527 = vunpack.c.h.b16 %v338
    %v528 = vunpack.c.l.b16 %v339
    %v529 = vunpack.c.h.b16 %v339
    %v530 = vunpack.c.l.b16 %v340
    %v531 = vunpack.c.h.b16 %v340
    %v532 = vunpack.c.l.b16 %v341
    %v533 = vunpack.c.h.b16 %v341
    %v534 = vunpack.c.l.b16 %v342
    %v535 = vunpack.c.h.b16 %v342
    %v536 = vunpack.c.l.b16 %v343
    %v537 = vunpack.c.h.b16 %v343
    %v538 = vunpack.c.l.b16 %v344
    %v539 = vunpack.c.h.b16 %v344
    %v540 = vunpack.c.l.b16 %v345
    %v541 = vunpack.c.h.b16 %v345
    %v542 = vunpack.c.l.b16 %v346
    %v543 = vunpack.c.h.b16 %v346
    %v544 = vunpack.c.l.b16 %v347
    %v545 = vunpack.c.h.b16 %v347
    %v546 = vunpack.c.l.b16 %v348
    %v547 = vunpack.c.h.b16 %v348
    %v548 = vunpack.c.l.b16 %v349
    %v549 = vunpack.c.h.b16 %v349
    %v550 = vunpack.c.l.b16 %v350
    %v551 = vunpack.c.h.b16 %v350
    %v552 = vunpack.c.l.b16 %v351
    %v553 = vunpack.c.h.b16 %v351
    %v554 = vunpack.c.l.b16 %v352
    %v555 = vunpack.c.h.b16 %v352
    %v556 = vunpack.c.l.b16 %v353
    %v557 = vunpack.c.h.b16 %v353
    %v558 = vpack.c.b16 %v432, %v430
    %v559 = vpack.c.b16 %v433, %v431
    %v560 = vpack.c.b16 %v436, %v434
    %v561 = vpack.c.b16 %v437, %v435
    %v562 = vpack.c.b16 %v440, %v438
    %v563 = vpack.c.b16 %v441, %v439
    %v564 = vpack.c.b16 %v444, %v442
    %v565 = vpack.c.b16 %v445, %v443
    %v566 = vpack.c.b16 %v448, %v446
    %v567 = vpack.c.b16 %v449, %v447
    %v568 = vpack.c.b16 %v452, %v450
    %v569 = vpack.c.b16 %v453, %v451
    %v570 = vpack.c.b16 %v456, %v454
    %v571 = vpack.c.b16 %v457, %v455
    %v572 = vpack.c.b16 %v460, %v458
    %v573 = vpack.c.b16 %v461, %v459
    %v574 = vpack.c.b16 %v464, %v462
    %v575 = vpack.c.b16 %v465, %v463
    %v576 = vpack.c.b16 %v468, %v466
    %v577 = vpack.c.b16 %v469, %v467
    %v578 = vpack.c.b16 %v472, %v470
    %v579 = vpack.c.b16 %v473, %v471
    %v580 = vpack.c.b16 %v476, %v474
    %v581 = vpack.c.b16 %v477, %v475
    %v582 = vpack.c.b16 %v480, %v478
    %v583 = vpack.c.b16 %v481, %v479
    %v584 = vpack.c.b16 %v484, %v482
    %v585 = vpack.c.b16 %v485, %v483
    %v586 = vpack.c.b16 %v488, %v486
    %v587 = vpack.c.b16 %v489, %v487
    %v588 = vpack.c.b16 %v492, %v490
    %v589 = vpack.c.b16 %v493, %v491
    %v590 = vpack.c.b16 %v496, %v494
    %v591 = vpack.c.b16 %v497, %v495
    %v592 = vpack.c.b16 %v500, %v498
    %v593 = vpack.c.b16 %v501, %v499
    %v594 = vpack.c.b16 %v504, %v502
    %v595 = vpack.c.b16 %v505, %v503
    %v596 = vpack.c.b16 %v508, %v506
    %v597 = vpack.c.b16 %v509, %v507
    %v598 = vpack.c.b16 %v512, %v510
    %v599 = vpack.c.b16 %v513, %v511
    %v600 = vpack.c.b16 %v516, %v514
    %v601 = vpack.c.b16 %v517, %v515
    %v602 = vpack.c.b16 %v520, %v518
    %v603 = vpack.c.b16 %v521, %v519
    %v604 = vpack.c.b16 %v524, %v522
    %v605 = vpack.c.b16 %v525, %v523
    %v606 = vpack.c.b16 %v528, %v526
    %v607 = vpack.c.b16 %v529, %v527
    %v608 = vpack.c.b16 %v532, %v530
    %v609 = vpack.c.b16 %v533, %v531
    %v610 = vpack.c.b16 %v536, %v534
    %v611 = vpack.c.b16 %v537, %v535
    %v612 = vpack.c.b16 %v540, %v538
    %v613 = vpack.c.b16 %v541, %v539
    %v614 = vpack.c.b16 %v544, %v542
    %v615 = vpack.c.b16 %v545, %v543
    %v616 = vpack.c.b16 %v548, %v546
    %v617 = vpack.c.b16 %v549, %v547
    %v618 = vpack.c.b16 %v552, %v550
    %v619 = vpack.c.b16 %v553, %v551
    %v620 = vpack.c.b16 %v556, %v554
    %v621 = vpack.c.b16 %v557, %v555
    %686 = vmatprep.subr.bf16.mxu0 %v573
    %687 = vmatpush1.bf16.msra.mxu0 %v572
    %688 = vmatprep.subr.bf16.mxu0 %v571
    %689 = vmatpush1.bf16.msra.mxu0 %v570
    %690 = vmatprep.subr.bf16.mxu0 %v569
    %691 = vmatpush1.bf16.msra.mxu0 %v568
    %692 = vmatprep.subr.bf16.mxu0 %v567
    %693 = vmatpush1.bf16.msra.mxu0 %v566
    %694 = vmatprep.subr.bf16.mxu0 %v565
    %695 = vmatpush1.bf16.msra.mxu0 %v564
    %696 = vmatprep.subr.bf16.mxu0 %v563
    %697 = vmatpush1.bf16.msra.mxu0 %v562
    %698 = vmatprep.subr.bf16.mxu0 %v561
    %699 = vmatpush1.bf16.msra.mxu0 %v560
    %700 = vmatprep.subr.bf16.mxu0 %v559
    %701 = vmatpush1.bf16.msra.mxu0 %v558
    %702 = vmatprep.subr.bf16.mxu0 %v589
    %703 = vmatpush2.bf16.msra.mxu0 %v588
    %704 = vmatprep.subr.bf16.mxu0 %v587
    %705 = vmatpush2.bf16.msra.mxu0 %v586
    %706 = vmatprep.subr.bf16.mxu0 %v585
    %707 = vmatpush2.bf16.msra.mxu0 %v584
    %708 = vmatprep.subr.bf16.mxu0 %v583
    %709 = vmatpush2.bf16.msra.mxu0 %v582
    %710 = vmatprep.subr.bf16.mxu0 %v581
    %711 = vmatpush2.bf16.msra.mxu0 %v580
    %712 = vmatprep.subr.bf16.mxu0 %v579
    %713 = vmatpush2.bf16.msra.mxu0 %v578
    %714 = vmatprep.subr.bf16.mxu0 %v577
    %715 = vmatpush2.bf16.msra.mxu0 %v576
    %716 = vmatprep.subr.bf16.mxu0 %v575
    %717 = vmatpush2.bf16.msra.mxu0 %v574
    %718 = vmatprep.mubr.bf16.mxu0 %v287
    %719 = vmatmul.mubr.bf16.gmra.mxu0 %v286
    %v720 = vpop.f32.mrf.mxu0
    %v721 = vadd.f32 %v359, %v720
    %v722 = vpop.f32.mrf.mxu0
    %v723 = vadd.f32 %v363, %v722
    %v724 = vpop.f32.mrf.mxu0
    %v725 = vpop.f32.mrf.mxu0
    %726 = vdwg.mxu0
    %727 = vmatprep.subr.bf16.mxu0 %v605
    %728 = vmatpush1.bf16.msra.mxu0 %v604
    %729 = vmatprep.subr.bf16.mxu0 %v603
    %730 = vmatpush1.bf16.msra.mxu0 %v602
    %731 = vmatprep.subr.bf16.mxu0 %v601
    %732 = vmatpush1.bf16.msra.mxu0 %v600
    %733 = vmatprep.subr.bf16.mxu0 %v599
    %734 = vmatpush1.bf16.msra.mxu0 %v598
    %735 = vmatprep.subr.bf16.mxu0 %v597
    %736 = vmatpush1.bf16.msra.mxu0 %v596
    %737 = vmatprep.subr.bf16.mxu0 %v595
    %738 = vmatpush1.bf16.msra.mxu0 %v594
    %739 = vmatprep.subr.bf16.mxu0 %v593
    %740 = vmatpush1.bf16.msra.mxu0 %v592
    %741 = vmatprep.subr.bf16.mxu0 %v591
    %742 = vmatpush1.bf16.msra.mxu0 %v590
    %743 = vmatprep.subr.bf16.mxu0 %v621
    %744 = vmatpush2.bf16.msra.mxu0 %v620
    %745 = vmatprep.subr.bf16.mxu0 %v619
    %746 = vmatpush2.bf16.msra.mxu0 %v618
    %747 = vmatprep.subr.bf16.mxu0 %v617
    %748 = vmatpush2.bf16.msra.mxu0 %v616
    %749 = vmatprep.subr.bf16.mxu0 %v615
    %750 = vmatpush2.bf16.msra.mxu0 %v614
    %751 = vmatprep.subr.bf16.mxu0 %v613
    %752 = vmatpush2.bf16.msra.mxu0 %v612
    %753 = vmatprep.subr.bf16.mxu0 %v611
    %754 = vmatpush2.bf16.msra.mxu0 %v610
    %755 = vmatprep.subr.bf16.mxu0 %v609
    %756 = vmatpush2.bf16.msra.mxu0 %v608
    %757 = vmatprep.subr.bf16.mxu0 %v607
    %758 = vmatpush2.bf16.msra.mxu0 %v606
    %759 = vmatprep.mubr.bf16.mxu0 %v289
    %760 = vmatmul.mubr.bf16.gmra.mxu0 %v288
    %v761 = vpop.f32.mrf.mxu0
    %v762 = vadd.f32 %v721, %v761
    %v763 = vpop.f32.mrf.mxu0
    %v764 = vadd.f32 %v723, %v763
    %v765 = vpop.f32.mrf.mxu0
    %v766 = vpop.f32.mrf.mxu0
    %767 = vdwg.mxu0
    %v768 = vmul.f32 %v762, 0.5
    %v769 = vmul.f32 %v764, 0.5
    %v770 = vtanh.pop %v768
    %v771 = vtanh.pop %v769
    %v772 = vadd.f32 %v770, 1.0
    %v773 = vadd.f32 %v771, 1.0
    %v774 = vmul.f32 %v772, 0.5
    %v775 = vmul.f32 %v773, 0.5
    %v776 = vpack.c.bf16 %v774, %v774
    %v777 = vpack.c.bf16 %v775, %v775
    %v778 = vld [vmem:[#allocation10] sm:$0xf]
    %v779 = vld [vmem:[#allocation10 + $0x4] sm:$0xf]
    %v780 = vld [vmem:[#allocation10 + $0x8] sm:$0xf]
    %v781 = vld [vmem:[#allocation10 + $0xc] sm:$0xf]
    %v782 = vld [vmem:[#allocation10 + $0x10] sm:$0xf]
    %v783 = vld [vmem:[#allocation10 + $0x14] sm:$0xf]
    %v784 = vld [vmem:[#allocation10 + $0x18] sm:$0xf]
    %v785 = vld [vmem:[#allocation10 + $0x1c] sm:$0xf]
    %v786 = vld [vmem:[#allocation10 + $0x20] sm:$0xf]
    %v787 = vld [vmem:[#allocation10 + $0x24] sm:$0xf]
    %v788 = vld [vmem:[#allocation10 + $0x28] sm:$0xf]
    %v789 = vld [vmem:[#allocation10 + $0x2c] sm:$0xf]
    %v790 = vld [vmem:[#allocation10 + $0x30] sm:$0xf]
    %v791 = vld [vmem:[#allocation10 + $0x34] sm:$0xf]
    %v792 = vld [vmem:[#allocation10 + $0x38] sm:$0xf]
    %v793 = vld [vmem:[#allocation10 + $0x3c] sm:$0xf]
    %v794 = vld [vmem:[#allocation10 + $0x40] sm:$0xf]
    %v795 = vld [vmem:[#allocation10 + $0x44] sm:$0xf]
    %v796 = vld [vmem:[#allocation10 + $0x48] sm:$0xf]
    %v797 = vld [vmem:[#allocation10 + $0x4c] sm:$0xf]
    %v798 = vld [vmem:[#allocation10 + $0x50] sm:$0xf]
    %v799 = vld [vmem:[#allocation10 + $0x54] sm:$0xf]
    %v800 = vld [vmem:[#allocation10 + $0x58] sm:$0xf]
    %v801 = vld [vmem:[#allocation10 + $0x5c] sm:$0xf]
    %v802 = vld [vmem:[#allocation10 + $0x60] sm:$0xf]
    %v803 = vld [vmem:[#allocation10 + $0x64] sm:$0xf]
    %v804 = vld [vmem:[#allocation10 + $0x68] sm:$0xf]
    %v805 = vld [vmem:[#allocation10 + $0x6c] sm:$0xf]
    %v806 = vld [vmem:[#allocation10 + $0x70] sm:$0xf]
    %v807 = vld [vmem:[#allocation10 + $0x74] sm:$0xf]
    %v808 = vld [vmem:[#allocation10 + $0x78] sm:$0xf]
    %v809 = vld [vmem:[#allocation10 + $0x7c] sm:$0xf]
    %v810 = vld [vmem:[%s6] sm:$0x1]
    %v812 = vlaneseq
    %v813 = vshrl.u32 %v812, 7
    %v814 = vsub.s32 0, %v813
    %v815 = vrot.slane %v810, %v814
    %v849 = vunpack.c.l.b16 %v778
    %v850 = vunpack.c.l.b16 %v779
    %v851 = vunpack.c.l.b16 %v780
    %v852 = vunpack.c.l.b16 %v781
    %v853 = vunpack.c.l.b16 %v782
    %v854 = vunpack.c.l.b16 %v783
    %v855 = vunpack.c.l.b16 %v784
    %v856 = vunpack.c.l.b16 %v785
    %v857 = vunpack.c.l.b16 %v786
    %v858 = vunpack.c.l.b16 %v787
    %v859 = vunpack.c.l.b16 %v788
    %v860 = vunpack.c.l.b16 %v789
    %v861 = vunpack.c.l.b16 %v790
    %v862 = vunpack.c.l.b16 %v791
    %v863 = vunpack.c.l.b16 %v792
    %v864 = vunpack.c.l.b16 %v793
    %v865 = vunpack.c.l.b16 %v794
    %v866 = vunpack.c.l.b16 %v795
    %v867 = vunpack.c.l.b16 %v796
    %v868 = vunpack.c.l.b16 %v797
    %v869 = vunpack.c.l.b16 %v798
    %v870 = vunpack.c.l.b16 %v799
    %v871 = vunpack.c.l.b16 %v800
    %v872 = vunpack.c.l.b16 %v801
    %v873 = vunpack.c.l.b16 %v802
    %v874 = vunpack.c.l.b16 %v803
    %v875 = vunpack.c.l.b16 %v804
    %v876 = vunpack.c.l.b16 %v805
    %v877 = vunpack.c.l.b16 %v806
    %v878 = vunpack.c.l.b16 %v807
    %v879 = vunpack.c.l.b16 %v808
    %v880 = vunpack.c.l.b16 %v809
    %v881 = vpack.c.b16 %v850, %v849
    %v882 = vpack.c.b16 %v852, %v851
    %v883 = vpack.c.b16 %v854, %v853
    %v884 = vpack.c.b16 %v856, %v855
    %v885 = vpack.c.b16 %v858, %v857
    %v886 = vpack.c.b16 %v860, %v859
    %v887 = vpack.c.b16 %v862, %v861
    %v888 = vpack.c.b16 %v864, %v863
    %v889 = vpack.c.b16 %v866, %v865
    %v890 = vpack.c.b16 %v868, %v867
    %v891 = vpack.c.b16 %v870, %v869
    %v892 = vpack.c.b16 %v872, %v871
    %v893 = vpack.c.b16 %v874, %v873
    %v894 = vpack.c.b16 %v876, %v875
    %v895 = vpack.c.b16 %v878, %v877
    %v896 = vpack.c.b16 %v880, %v879
    %913 = vmatprep.subr.bf16.mxu0 0
    %914 = vmatpush1.bf16.msra.mxu0 %v888
    %915 = vmatprep.subr.bf16.mxu0 0
    %916 = vmatpush1.bf16.msra.mxu0 %v887
    %917 = vmatprep.subr.bf16.mxu0 0
    %918 = vmatpush1.bf16.msra.mxu0 %v886
    %919 = vmatprep.subr.bf16.mxu0 0
    %920 = vmatpush1.bf16.msra.mxu0 %v885
    %921 = vmatprep.subr.bf16.mxu0 0
    %922 = vmatpush1.bf16.msra.mxu0 %v884
    %923 = vmatprep.subr.bf16.mxu0 0
    %924 = vmatpush1.bf16.msra.mxu0 %v883
    %925 = vmatprep.subr.bf16.mxu0 0
    %926 = vmatpush1.bf16.msra.mxu0 %v882
    %927 = vmatprep.subr.bf16.mxu0 0
    %928 = vmatpush1.bf16.msra.mxu0 %v881
    %929 = vmatprep.subr.bf16.mxu0 0
    %930 = vmatpush2.bf16.msra.mxu0 %v896
    %931 = vmatprep.subr.bf16.mxu0 0
    %932 = vmatpush2.bf16.msra.mxu0 %v895
    %933 = vmatprep.subr.bf16.mxu0 0
    %934 = vmatpush2.bf16.msra.mxu0 %v894
    %935 = vmatprep.subr.bf16.mxu0 0
    %936 = vmatpush2.bf16.msra.mxu0 %v893
    %937 = vmatprep.subr.bf16.mxu0 0
    %938 = vmatpush2.bf16.msra.mxu0 %v892
    %939 = vmatprep.subr.bf16.mxu0 0
    %940 = vmatpush2.bf16.msra.mxu0 %v891
    %941 = vmatprep.subr.bf16.mxu0 0
    %942 = vmatpush2.bf16.msra.mxu0 %v890
    %943 = vmatprep.subr.bf16.mxu0 0
    %944 = vmatpush2.bf16.msra.mxu0 %v889
    %945 = vmatprep.mubr.bf16.mxu0 %v777
    %946 = vmatmul.mubr.bf16.gmra.mxu0 %v776
    %v947 = vpop.f32.mrf.mxu0
    %v948 = vadd.f32 %v815, %v947
    %v949 = vpop.f32.mrf.mxu0
    %v950 = vpop.f32.mrf.mxu0
    %v951 = vpop.f32.mrf.mxu0
    %952 = vdwg.mxu0
    %v953 = vmul.f32 %v948, 0.5
    %v954 = vtanh.pop %v953
    %v955 = vadd.f32 %v954, 1.0
    %v956 = vmul.f32 %v955, 0.5
    %v957 = vpack.c.bf16 %v956, %v956
    %v958 = vld [vmem:[#allocation11] sm:$0xf]
    %v959 = vld [vmem:[#allocation11 + $0x4] sm:$0xf]
    %v960 = vld [vmem:[#allocation11 + $0x8] sm:$0xf]
    %v961 = vld [vmem:[#allocation11 + $0xc] sm:$0xf]
    %v962 = vld [vmem:[#allocation11 + $0x10] sm:$0xf]
    %v963 = vld [vmem:[#allocation11 + $0x14] sm:$0xf]
    %v964 = vld [vmem:[#allocation11 + $0x18] sm:$0xf]
    %v965 = vld [vmem:[#allocation11 + $0x1c] sm:$0xf]
    %v966 = vld [vmem:[#allocation11 + $0x20] sm:$0xf]
    %v967 = vld [vmem:[#allocation11 + $0x24] sm:$0xf]
    %v968 = vld [vmem:[#allocation11 + $0x28] sm:$0xf]
    %v969 = vld [vmem:[#allocation11 + $0x2c] sm:$0xf]
    %v970 = vld [vmem:[#allocation11 + $0x30] sm:$0xf]
    %v971 = vld [vmem:[#allocation11 + $0x34] sm:$0xf]
    %v972 = vld [vmem:[#allocation11 + $0x38] sm:$0xf]
    %v973 = vld [vmem:[#allocation11 + $0x3c] sm:$0xf]
    %v974 = vld [vmem:[%s8] sm:$0x1]
    %v976 = vlaneseq
    %v977 = vshrl.u32 %v976, 7
    %v978 = vsub.s32 0, %v977
    %v979 = vrot.slane %v974, %v978
    %v997 = vunpack.c.l.b16 %v958
    %v998 = vunpack.c.l.b16 %v959
    %v999 = vunpack.c.l.b16 %v960
    %v1000 = vunpack.c.l.b16 %v961
    %v1001 = vunpack.c.l.b16 %v962
    %v1002 = vunpack.c.l.b16 %v963
    %v1003 = vunpack.c.l.b16 %v964
    %v1004 = vunpack.c.l.b16 %v965
    %v1005 = vunpack.c.l.b16 %v966
    %v1006 = vunpack.c.l.b16 %v967
    %v1007 = vunpack.c.l.b16 %v968
    %v1008 = vunpack.c.l.b16 %v969
    %v1009 = vunpack.c.l.b16 %v970
    %v1010 = vunpack.c.l.b16 %v971
    %v1011 = vunpack.c.l.b16 %v972
    %v1012 = vunpack.c.l.b16 %v973
    %v1013 = vpack.c.b16 %v998, %v997
    %v1014 = vpack.c.b16 %v1000, %v999
    %v1015 = vpack.c.b16 %v1002, %v1001
    %v1016 = vpack.c.b16 %v1004, %v1003
    %v1017 = vpack.c.b16 %v1006, %v1005
    %v1018 = vpack.c.b16 %v1008, %v1007
    %v1019 = vpack.c.b16 %v1010, %v1009
    %v1020 = vpack.c.b16 %v1012, %v1011
    %1029 = vmatprep.subr.bf16.mxu0 0
    %1030 = vmatpush1.bf16.msra.mxu0 %v1020
    %1031 = vmatprep.subr.bf16.mxu0 0
    %1032 = vmatpush1.bf16.msra.mxu0 %v1019
    %1033 = vmatprep.subr.bf16.mxu0 0
    %1034 = vmatpush1.bf16.msra.mxu0 %v1018
    %1035 = vmatprep.subr.bf16.mxu0 0
    %1036 = vmatpush1.bf16.msra.mxu0 %v1017
    %1037 = vmatprep.subr.bf16.mxu0 0
    %1038 = vmatpush1.bf16.msra.mxu0 %v1016
    %1039 = vmatprep.subr.bf16.mxu0 0
    %1040 = vmatpush1.bf16.msra.mxu0 %v1015
    %1041 = vmatprep.subr.bf16.mxu0 0
    %1042 = vmatpush1.bf16.msra.mxu0 %v1014
    %1043 = vmatprep.subr.bf16.mxu0 0
    %1044 = vmatpush1.bf16.msra.mxu0 %v1013
    %1045 = vmatprep.subr.bf16.mxu0 0
    %1046 = vmatpush2.bf16.msra.mxu0 0
    %1047 = vmatprep.subr.bf16.mxu0 0
    %1048 = vmatpush2.bf16.msra.mxu0 0
    %1049 = vmatprep.subr.bf16.mxu0 0
    %1050 = vmatpush2.bf16.msra.mxu0 0
    %1051 = vmatprep.subr.bf16.mxu0 0
    %1052 = vmatpush2.bf16.msra.mxu0 0
    %1053 = vmatprep.subr.bf16.mxu0 0
    %1054 = vmatpush2.bf16.msra.mxu0 0
    %1055 = vmatprep.subr.bf16.mxu0 0
    %1056 = vmatpush2.bf16.msra.mxu0 0
    %1057 = vmatprep.subr.bf16.mxu0 0
    %1058 = vmatpush2.bf16.msra.mxu0 0
    %1059 = vmatprep.subr.bf16.mxu0 0
    %1060 = vmatpush2.bf16.msra.mxu0 0
    %1061 = vmatprep.mubr.bf16.mxu0 0
    %1062 = vmatmul.mubr.bf16.gmra.mxu0 %v957
    %v1063 = vpop.f32.mrf.mxu0
    %v1064 = vadd.f32 %v979, %v1063
    %v1065 = vpop.f32.mrf.mxu0
    %v1066 = vpop.f32.mrf.mxu0
    %v1067 = vpop.f32.mrf.mxu0
    %1068 = vdwg.mxu0
    %vm1069 = vcmask 1041408
    %v1070 = vsel %vm1069, %v1064, -inf
    %1071 = vmax.xlane.f32.xlu0 %v1070
    %v1072 = vpop.xlane.xlu0 %1071
    %v1073 = vsub.f32 %v1064, %v1072
    %v1074 = vmul.f32 %v1073, 1.442695
    %v1075 = vpow.pop %v1074
    %v1076 = vsel %vm1069, %v1075, 0.0
    %1077 = vadd.xlane.f32.xlu0 %v1076
    %v1078 = vpop.xlane.xlu0 %1077
    %v1079 = vrcp.pop %v1078
    %v1080 = vmul.f32 1.0, %v1079
    %v1081 = vmul.f32 %v1075, %v1080
    %1082 = vst [vmem:[#allocation13] sm:$0x3] %v1081
    // Predicated region
    $region62: #{_mlp_forward.1} parent=1 // pred_check
      _
    $region63: #{_mlp_forward.1} parent=1 // pred_check_branch
      %1084 = sbr.rel (0) target = $region65
    $region64: #{_mlp_forward.1} parent=1 // pred_region
      %s1086 = ssub.s32 32, 32
      %1087 = vsyncadd [#allocation4], %s1086
      %s1089 = sshll.u32 [#allocation13], 4
      %s1090 = int_to_ptr.vmem [resolvable:$true] %s1089
      %1092 = dma.vmem_to_hbm [thread:$0]  %s1090, 32, %s9, [#allocation4]
    $region65: #{_mlp_forward.1} parent=1 // pred_fallthru
      _
    // Predicated region
    $region66: #{_mlp_forward.1} parent=1 // pred_check
      _
    $region67: #{_mlp_forward.1} parent=1 // pred_check_branch
      %1094 = sbr.rel (0) target = $region69
    $region68: #{_mlp_forward.1} parent=1 // pred_region
      %1095 = dma.done [#allocation4], 32
    $region69: #{_mlp_forward.1} parent=1 // pred_fallthru
      _
    %1096 = vsyncpa [#allocation3], 1
    %1097 = vsyncpa [#allocation6], 1
    %1098 = vsyncpa [#allocation9], 1
    %1099 = vsyncpa [#allocation12], 1
    %1100 = vsyncpa [#allocation4], 1

</llo_original>
